<compile_context>
chip_gen: v5e
topology: v5e:2x2
jax: 0.10.0
libtpu: 0.0.40
codegen_flags: <defaults>
</compile_context>

<pallas_src>
import functools
import math

import jax
import jax.numpy as jnp
from jax import lax
from jax.experimental import pallas as pl
from jax.experimental.pallas import tpu as pltpu

N_CHANS = 3
KH, KW = 3, 3
PAD_H, PAD_W = 1, 3


def _conv_sum_abs_kernel(w_ref, mask_ref, x_ref, o_ref, *, b_blk, c_in, w_pad, l_buf):
    """One program per batch group.

    w_ref    : VMEM f32[c_in*b_blk, KH*KW] effective weights (0.1 * sum_co weight),
               rows channel-major to match x_ref.
    mask_ref : VMEM f32[1, L_buf]          1.0 at valid flat conv-output positions.
    x_ref    : VMEM f32[c_in*b_blk, L_buf] fully zero-padded planes, flattened on
               lanes, rows ordered [c0 b0, c0 b1, ..., c1 b0, ...].
    o_ref    : VMEM f32[1, 8, 128]         per-group partial sum (scalar broadcast).
    """
    padded = x_ref[...]                     # loaded once, lane-dense
    wv = w_ref[...]                         # weight tile loaded once

    # Conv taps as lane rolls: output flat index i reads padded flat index
    # i + ky*W_pad + kx, identical for every sublane row, so one roll serves all
    # batch*channel rows. Tap (0,0) initializes the accumulator.
    acc = wv[:, 0:1] * padded
    for ky in range(KH):
        for kx in range(KW):
            tap = ky * KW + kx
            if tap == 0:
                continue
            shift = ky * w_pad + kx
            rolled = pltpu.roll(padded, shift=l_buf - shift, axis=1)
            acc = acc + wv[:, tap:tap + 1] * rolled

    # Channel sum per image (contiguous sublane slices, rows are channel-major),
    # then |.| * mask (mask is exact 0/1 float), then scalar partial.
    y = acc[0:b_blk, :]
    for c in range(1, c_in):
        y = y + acc[c * b_blk:(c + 1) * b_blk, :]
    y = jnp.abs(y) * mask_ref[...]
    total = jnp.sum(y)
    o_ref[...] = jnp.broadcast_to(total, o_ref.shape).astype(o_ref.dtype)


def module0_forward(image_nchw, weight):
    """image_nchw: f32[N, 3, H, W]; weight: f32[3, 3, 3, 3] (OIHW). Returns f32 scalar."""
    x = image_nchw.astype(jnp.float32)
    n, c_in, h, w = x.shape
    h_pad, w_pad = h + 2 * PAD_H, w + 2 * PAD_W
    h_out, w_out = h_pad - (KH - 1), w_pad - (KW - 1)
    l_plane = h_pad * w_pad
    l_buf = ((l_plane + 127) // 128) * 128          # lane-dense, roll-friendly

    # Roll wrap-around safety: the largest *valid* output lane must never read a
    # wrapped lane for any tap. Holds for this geometry; guard future changes.
    max_shift = (KH - 1) * w_pad + (KW - 1)
    assert (h_out - 1) * w_pad + (w_out - 1) + max_shift < l_buf

    # ---- batch blocking: pack batch*channel onto sublanes. Keep >=2 parallel
    # grid steps (v7x has 2 TCs) only when the batch is large enough that each
    # step still fills sublanes and stays (8, 128)-block-legal.
    unit = 8 // math.gcd(8, c_in)                   # smallest b_blk with b_blk*c_in % 8 == 0
    if n * c_in <= 8 or n < 2 * unit:
        b_blk, n_steps = n, 1                       # single step, full pack
    else:
        b_blk = unit * max(1, n // (2 * unit))
        n_steps = -(-n // b_blk)
    n_pad = b_blk * n_steps                         # zero images contribute exactly 0
    rows = c_in * b_blk

    # ---- effective weights: pre-reduce over output channels, fold the 0.1 scale.
    w_eff = 0.1 * jnp.sum(weight.astype(jnp.float32), axis=0)        # (c_in, KH, KW)
    w_eff = w_eff.reshape(c_in, KH * KW)
    w_rows = jnp.repeat(w_eff, b_blk, axis=0)                        # channel-major rows

    # ---- validity mask over the flattened padded plane: flat i = hp*W_pad + wp
    # is a real conv output iff hp < H_out and wp < W_out.
    idx = jnp.arange(l_buf, dtype=jnp.int32)
    mask = (((idx % w_pad) < w_out) & ((idx // w_pad) < h_out)).astype(jnp.float32)[None, :]

    # ---- pre-pad fully in the wrapper (H, W, batch, lane tail); flatten planes
    # onto lanes; reorder to channel-major rows within each batch group.
    xp = jnp.pad(x, ((0, n_pad - n), (0, 0), (PAD_H, PAD_H), (PAD_W, PAD_W)))
    xp = xp.reshape(n_pad, c_in, l_plane)
    xp = jnp.pad(xp, ((0, 0), (0, 0), (0, l_buf - l_plane)))
    xp = xp.reshape(n_steps, b_blk, c_in, l_buf).transpose(0, 2, 1, 3)
    x_rows = xp.reshape(n_steps * rows, l_buf)

    kernel = functools.partial(_conv_sum_abs_kernel, b_blk=b_blk, c_in=c_in,
                               w_pad=w_pad, l_buf=l_buf)

    flops = 2 * n * h_out * w_out * c_in * KH * KW
    bytes_accessed = (x_rows.size + w_rows.size + mask.size + n_steps * 8 * 128) * 4

    partial = pl.pallas_call(
        kernel,
        out_shape=jax.ShapeDtypeStruct((n_steps, 8, 128), jnp.float32),
        grid=(n_steps,),
        in_specs=[
            pl.BlockSpec((rows, KH * KW), lambda i: (0, 0)),   # effective weights
            pl.BlockSpec((1, l_buf), lambda i: (0, 0)),        # validity mask
            pl.BlockSpec((rows, l_buf), lambda i: (i, 0)),     # one batch group
        ],
        out_specs=pl.BlockSpec((1, 8, 128), lambda i: (i, 0, 0)),
        compiler_params=pltpu.CompilerParams(
            dimension_semantics=("parallel",)),                # batch-group axis -> both TCs on v7x
        cost_estimate=pl.CostEstimate(
            flops=flops, transcendentals=0, bytes_accessed=bytes_accessed),
    )(w_rows, mask, x_rows)

    # Per-group scalar partials (broadcast over the (8,128) tile) -> module scalar.
    return jnp.sum(partial[:, 0, 0])


def _reference(image_nchw, weight):
    """Pure-JAX reference (lax conv) for correctness checking."""
    y = lax.conv_general_dilated(
        image_nchw.astype(jnp.float32),
        weight.astype(jnp.float32),
        window_strides=(1, 1),
        padding=((PAD_H, PAD_H), (PAD_W, PAD_W)),
        dimension_numbers=("NCHW", "OIHW", "NCHW"),
    )
    y = jnp.sum(y, axis=1)
    return jnp.sum(0.1 * jnp.abs(y))


if __name__ == "__main__":
    key = jax.random.PRNGKey(0)
    k_img, k_w = jax.random.split(key)

    # Small deterministic shapes: batch=2, channels=3, spatial=16x16.
    image0 = jax.random.normal(k_img, (2, N_CHANS, 16, 16), dtype=jnp.float32)
    # Conv2d weight shape: (out_ch, in_ch, 3, 3), PyTorch-style uniform init.
    fan_in = N_CHANS * KH * KW
    bound = 1.0 / (fan_in ** 0.5)
    weight = jax.random.uniform(
        k_w, (N_CHANS, N_CHANS, KH, KW), minval=-bound, maxval=bound, dtype=jnp.float32
    )

    inputs = (image0,)  # Module0.forward takes a sequence; uses inputs[0]

    result = jax.block_until_ready(module0_forward(inputs[0], weight))
    ref = jax.block_until_ready(_reference(inputs[0], weight))
    assert jnp.allclose(result, ref, rtol=1e-4, atol=1e-5), (result, ref)

    print("KERNEL_OK")
</pallas_src>

<mosaic_0001>
module attributes {stable_mosaic.version = 11 : i64} {
  func.func @_conv_sum_abs_kernel(%arg0: i32, %arg1: memref<6x9xf32, #tpu.memory_space<vmem>>, %arg2: memref<1x512xf32, #tpu.memory_space<vmem>>, %arg3: memref<6x512xf32, #tpu.memory_space<vmem>>, %arg4: memref<1x8x128xf32, #tpu.memory_space<vmem>>) attributes {dimension_semantics = [#tpu.dimension_semantics<parallel>], iteration_bounds = array<i64: 1>, scalar_prefetch = 0 : i64, scratch_operands = 0 : i64, tpu.core_type = #tpu.core_type<tc>, window_params = [{pipeline_mode = #tpu.pipeline_mode<synchronous>, transform_indices = @transform_0, window_bounds = array<i64: 6, 9>}, {pipeline_mode = #tpu.pipeline_mode<synchronous>, transform_indices = @transform_1, window_bounds = array<i64: 1, 512>}, {transform_indices = @transform_2, window_bounds = array<i64: 6, 512>}, {transform_indices = @transform_3, window_bounds = array<i64: 1, 8, 128>}]} {
    %c0 = arith.constant 0 : index
    %c0_0 = arith.constant 0 : index
    %0 = vector.load %arg3[%c0, %c0_0] : memref<6x512xf32, #tpu.memory_space<vmem>>, vector<6x512xf32>
    %c0_1 = arith.constant 0 : index
    %c0_2 = arith.constant 0 : index
    %1 = vector.load %arg1[%c0_1, %c0_2] : memref<6x9xf32, #tpu.memory_space<vmem>>, vector<6x9xf32>
    %2 = vector.extract_strided_slice %1 {offsets = [0, 0], sizes = [6, 1], strides = [1, 1]} : vector<6x9xf32> to vector<6x1xf32>
    %3 = vector.broadcast %2 : vector<6x1xf32> to vector<6x512xf32>
    %4 = arith.mulf %3, %0 : vector<6x512xf32>
    %c511_i32 = arith.constant 511 : i32
    %5 = tpu.dynamic_rotate %0 by %c511_i32 dim 1 : vector<6x512xf32>, i32 -> vector<6x512xf32>
    %6 = vector.extract_strided_slice %1 {offsets = [0, 1], sizes = [6, 1], strides = [1, 1]} : vector<6x9xf32> to vector<6x1xf32>
    %7 = vector.broadcast %6 : vector<6x1xf32> to vector<6x512xf32>
    %8 = arith.mulf %7, %5 : vector<6x512xf32>
    %9 = arith.addf %4, %8 : vector<6x512xf32>
    %c510_i32 = arith.constant 510 : i32
    %10 = tpu.dynamic_rotate %0 by %c510_i32 dim 1 : vector<6x512xf32>, i32 -> vector<6x512xf32>
    %11 = vector.extract_strided_slice %1 {offsets = [0, 2], sizes = [6, 1], strides = [1, 1]} : vector<6x9xf32> to vector<6x1xf32>
    %12 = vector.broadcast %11 : vector<6x1xf32> to vector<6x512xf32>
    %13 = arith.mulf %12, %10 : vector<6x512xf32>
    %14 = arith.addf %9, %13 : vector<6x512xf32>
    %c490_i32 = arith.constant 490 : i32
    %15 = tpu.dynamic_rotate %0 by %c490_i32 dim 1 : vector<6x512xf32>, i32 -> vector<6x512xf32>
    %16 = vector.extract_strided_slice %1 {offsets = [0, 3], sizes = [6, 1], strides = [1, 1]} : vector<6x9xf32> to vector<6x1xf32>
    %17 = vector.broadcast %16 : vector<6x1xf32> to vector<6x512xf32>
    %18 = arith.mulf %17, %15 : vector<6x512xf32>
    %19 = arith.addf %14, %18 : vector<6x512xf32>
    %c489_i32 = arith.constant 489 : i32
    %20 = tpu.dynamic_rotate %0 by %c489_i32 dim 1 : vector<6x512xf32>, i32 -> vector<6x512xf32>
    %21 = vector.extract_strided_slice %1 {offsets = [0, 4], sizes = [6, 1], strides = [1, 1]} : vector<6x9xf32> to vector<6x1xf32>
    %22 = vector.broadcast %21 : vector<6x1xf32> to vector<6x512xf32>
    %23 = arith.mulf %22, %20 : vector<6x512xf32>
    %24 = arith.addf %19, %23 : vector<6x512xf32>
    %c488_i32 = arith.constant 488 : i32
    %25 = tpu.dynamic_rotate %0 by %c488_i32 dim 1 : vector<6x512xf32>, i32 -> vector<6x512xf32>
    %26 = vector.extract_strided_slice %1 {offsets = [0, 5], sizes = [6, 1], strides = [1, 1]} : vector<6x9xf32> to vector<6x1xf32>
    %27 = vector.broadcast %26 : vector<6x1xf32> to vector<6x512xf32>
    %28 = arith.mulf %27, %25 : vector<6x512xf32>
    %29 = arith.addf %24, %28 : vector<6x512xf32>
    %c468_i32 = arith.constant 468 : i32
    %30 = tpu.dynamic_rotate %0 by %c468_i32 dim 1 : vector<6x512xf32>, i32 -> vector<6x512xf32>
    %31 = vector.extract_strided_slice %1 {offsets = [0, 6], sizes = [6, 1], strides = [1, 1]} : vector<6x9xf32> to vector<6x1xf32>
    %32 = vector.broadcast %31 : vector<6x1xf32> to vector<6x512xf32>
    %33 = arith.mulf %32, %30 : vector<6x512xf32>
    %34 = arith.addf %29, %33 : vector<6x512xf32>
    %c467_i32 = arith.constant 467 : i32
    %35 = tpu.dynamic_rotate %0 by %c467_i32 dim 1 : vector<6x512xf32>, i32 -> vector<6x512xf32>
    %36 = vector.extract_strided_slice %1 {offsets = [0, 7], sizes = [6, 1], strides = [1, 1]} : vector<6x9xf32> to vector<6x1xf32>
    %37 = vector.broadcast %36 : vector<6x1xf32> to vector<6x512xf32>
    %38 = arith.mulf %37, %35 : vector<6x512xf32>
    %39 = arith.addf %34, %38 : vector<6x512xf32>
    %c466_i32 = arith.constant 466 : i32
    %40 = tpu.dynamic_rotate %0 by %c466_i32 dim 1 : vector<6x512xf32>, i32 -> vector<6x512xf32>
    %41 = vector.extract_strided_slice %1 {offsets = [0, 8], sizes = [6, 1], strides = [1, 1]} : vector<6x9xf32> to vector<6x1xf32>
    %42 = vector.broadcast %41 : vector<6x1xf32> to vector<6x512xf32>
    %43 = arith.mulf %42, %40 : vector<6x512xf32>
    %44 = arith.addf %39, %43 : vector<6x512xf32>
    %45 = vector.extract_strided_slice %44 {offsets = [0, 0], sizes = [2, 512], strides = [1, 1]} : vector<6x512xf32> to vector<2x512xf32>
    %46 = vector.extract_strided_slice %44 {offsets = [2, 0], sizes = [2, 512], strides = [1, 1]} : vector<6x512xf32> to vector<2x512xf32>
    %47 = arith.addf %45, %46 : vector<2x512xf32>
    %48 = vector.extract_strided_slice %44 {offsets = [4, 0], sizes = [2, 512], strides = [1, 1]} : vector<6x512xf32> to vector<2x512xf32>
    %49 = arith.addf %47, %48 : vector<2x512xf32>
    %50 = math.absf %49 : vector<2x512xf32>
    %c0_3 = arith.constant 0 : index
    %c0_4 = arith.constant 0 : index
    %51 = vector.load %arg2[%c0_3, %c0_4] : memref<1x512xf32, #tpu.memory_space<vmem>>, vector<1x512xf32>
    %52 = vector.broadcast %51 : vector<1x512xf32> to vector<2x512xf32>
    %53 = arith.mulf %50, %52 : vector<2x512xf32>
    %54 = vector.shape_cast %53 : vector<2x512xf32> to vector<1x2x512xf32>
    %cst = arith.constant dense<0.000000e+00> : vector<1xf32>
    %55 = vector.multi_reduction <add>, %54, %cst [1, 2] : vector<1x2x512xf32> to vector<1xf32>
    %56 = vector.shape_cast %55 : vector<1xf32> to vector<1x1x1xf32>
    %57 = vector.extract %56[0, 0, 0] : f32 from vector<1x1x1xf32>
    %58 = vector.broadcast %57 : f32 to vector<1x8x128xf32>
    %c0_5 = arith.constant 0 : index
    %c0_6 = arith.constant 0 : index
    %c0_7 = arith.constant 0 : index
    %59 = vector.load %arg4[%c0_5, %c0_6, %c0_7] : memref<1x8x128xf32, #tpu.memory_space<vmem>>, vector<1x8x128xf32>
    tpu.vector_store %arg4[%c0_5, %c0_6, %c0_7], %58 {strides = array<i32>} : memref<1x8x128xf32, #tpu.memory_space<vmem>>, vector<1x8x128xf32>,
    return
  }
  func.func @transform_0(%arg0: i32) -> (i32, i32) {
    %c0_i32 = arith.constant 0 : i32
    %c0_i32_0 = arith.constant 0 : i32
    %c0_i32_1 = arith.constant 0 : i32
    return %c0_i32, %c0_i32_0 : i32, i32
  }
  func.func @transform_1(%arg0: i32) -> (i32, i32) {
    %c0_i32 = arith.constant 0 : i32
    %c0_i32_0 = arith.constant 0 : i32
    %c0_i32_1 = arith.constant 0 : i32
    return %c0_i32, %c0_i32_0 : i32, i32
  }
  func.func @transform_2(%arg0: i32) -> (i32, i32) {
    %c0_i32 = arith.constant 0 : i32
    %c0_i32_0 = arith.constant 0 : i32
    return %arg0, %c0_i32 : i32, i32
  }
  func.func @transform_3(%arg0: i32) -> (i32, i32, i32) {
    %c0_i32 = arith.constant 0 : i32
    %c0_i32_0 = arith.constant 0 : i32
    %c0_i32_1 = arith.constant 0 : i32
    return %arg0, %c0_i32, %c0_i32_0 : i32, i32, i32
  }
}

</mosaic_0001>

<llo_original>
// kernel: tpu_custom_call.1
$region0: #{tpu_custom_call.1}
  #allocation0 [shape = 'u32[]', space=smem, size = 0x4, offset = 0x4, fixed_abs, tag = 'smem constant byte address 0x4 - core index']
  #allocation1 [shape = 'u32[72,128]{1,0:T(1,128)}', space=vmem, size = 0x9000, scoped, tag = 'internal scratch']
  %s0 = inlined_call_operand.hbm [shape: f32[6,9], index: 0, kind: input, shape index: {}]
  %s1 = inlined_call_operand.hbm [shape: f32[1,512], index: 1, kind: input, shape index: {}]
  %s2 = inlined_call_operand.hbm [shape: f32[6,512], index: 2, kind: input, shape index: {}]
  %s3 = inlined_call_operand.hbm [shape: f32[1,8,128], index: 3, kind: output, shape index: {}]
  %s4 = sld [smem:[#allocation0]]
  $region34: #{tpu_custom_call.1} parent=0
    _
  %s6 = ssub.s32 1, %s4
  %s7 = scalar_select 0, %s6, %s4
  $region1: #{tpu_custom_call.1} parent=0
    #allocation2 [shape = 'u8[4096]{0}', space=vmem, size = 0x1000, scoped, tag = 'input window, operand 0, single buffered']
    #allocation3 [shape = 's32[1]{0}', space=sflag, size = 0x4, scoped, tag = 'scoped memory for tpu_custom_call.1']
    #allocation4 [shape = 's32[1]{0}', space=sflag, size = 0x4, scoped, tag = 'scoped memory for tpu_custom_call.1']
    #allocation5 [shape = 'u8[2048]{0}', space=vmem, size = 0x800, scoped, tag = 'input window, operand 1, single buffered']
    #allocation6 [shape = 's32[1]{0}', space=sflag, size = 0x4, scoped, tag = 'scoped memory for tpu_custom_call.1']
    #allocation7 [shape = 'u8[16384]{0}', space=vmem, size = 0x4000, scoped, tag = 'input window, operand 2, single buffered']
    #allocation8 [shape = 'u8[4096]{0}', space=vmem, size = 0x1000, scoped, tag = 'output window, operand 0, single buffered']
    %8 = vsyncpa [#allocation3], 0
    %9 = vsyncpa [#allocation6], 0
    %10 = vsyncpa [#allocation4], 0
    // Predicated region
    $region2: #{tpu_custom_call.1} parent=1 // pred_check
      _
    $region3: #{tpu_custom_call.1} parent=1 // pred_check_branch
      %12 = sbr.rel (0) target = $region5
    $region4: #{tpu_custom_call.1} parent=1 // pred_region
      %14 = vsyncadd [#allocation3], 0
      %s16 = sshll.u32 %s0, 4
      %s17 = int_to_ptr.hbm [resolvable:$true] %s16
      %s18 = sshll.u32 [#allocation2], 4
      %s19 = int_to_ptr.vmem [resolvable:$true] %s18
      %21 = dma.hbm_to_vmem [thread:$0]  %s17, 128, %s19, [#allocation3]
    $region5: #{tpu_custom_call.1} parent=1 // pred_fallthru
      _
    // Predicated region
    $region6: #{tpu_custom_call.1} parent=1 // pred_check
      _
    $region7: #{tpu_custom_call.1} parent=1 // pred_check_branch
      %23 = sbr.rel (0) target = $region9
    $region8: #{tpu_custom_call.1} parent=1 // pred_region
      %25 = vsyncadd [#allocation6], 0
      %s27 = sshll.u32 %s1, 4
      %s28 = int_to_ptr.hbm [resolvable:$true] %s27
      %s29 = sshll.u32 [#allocation5], 4
      %s30 = int_to_ptr.vmem [resolvable:$true] %s29
      %32 = dma.hbm_to_vmem [thread:$0]  %s28, 64, %s30, [#allocation6]
    $region9: #{tpu_custom_call.1} parent=1 // pred_fallthru
      _
    // Predicated region
    $region10: #{tpu_custom_call.1} parent=1 // pred_check
      _
    $region11: #{tpu_custom_call.1} parent=1 // pred_check_branch
      %34 = sbr.rel (0) target = $region13
    $region12: #{tpu_custom_call.1} parent=1 // pred_region
      %36 = vsyncadd [#allocation6], 0
      %s38 = sshll.u32 %s2, 4
      %s39 = int_to_ptr.hbm [resolvable:$true] %s38
      %s40 = sshll.u32 [#allocation7], 4
      %s41 = int_to_ptr.vmem [resolvable:$true] %s40
      %43 = dma.hbm_to_vmem [thread:$0]  %s39, 512, %s41, [#allocation6]
    $region13: #{tpu_custom_call.1} parent=1 // pred_fallthru
      _
    // Predicated region
    $region14: #{tpu_custom_call.1} parent=1 // pred_check
      _
    $region15: #{tpu_custom_call.1} parent=1 // pred_check_branch
      %45 = sbr.rel (0) target = $region17
    $region16: #{tpu_custom_call.1} parent=1 // pred_region
      %47 = dma.done [#allocation3], 128
    $region17: #{tpu_custom_call.1} parent=1 // pred_fallthru
      _
    // Predicated region
    $region18: #{tpu_custom_call.1} parent=1 // pred_check
      _
    $region19: #{tpu_custom_call.1} parent=1 // pred_check_branch
      %49 = sbr.rel (0) target = $region21
    $region20: #{tpu_custom_call.1} parent=1 // pred_region
      %51 = dma.done [#allocation6], 64
    $region21: #{tpu_custom_call.1} parent=1 // pred_fallthru
      _
    // Predicated region
    $region22: #{tpu_custom_call.1} parent=1 // pred_check
      _
    $region23: #{tpu_custom_call.1} parent=1 // pred_check_branch
      %53 = sbr.rel (0) target = $region25
    $region24: #{tpu_custom_call.1} parent=1 // pred_region
      %55 = dma.done [#allocation6], 512
    $region25: #{tpu_custom_call.1} parent=1 // pred_fallthru
      _
    %v56 = vld [vmem:[#allocation7] sm:$0x3f]
    %v57 = vld [vmem:[#allocation7 + $0x8] sm:$0x3f]
    %v58 = vld [vmem:[#allocation7 + $0x10] sm:$0x3f]
    %v59 = vld [vmem:[#allocation7 + $0x18] sm:$0x3f]
    %v60 = vld [vmem:[#allocation2] sm:$0x3f]
    %62 = vset.pattern.permute.xlu0 0
    %63 = vperm.xlu0 %62, %v60
    %v64 = vpop.permute.xlu0 %63
    %v66 = vmul.f32 %v64, %v56
    %v67 = vmul.f32 %v64, %v57
    %v68 = vmul.f32 %v64, %v58
    %v69 = vmul.f32 %v64, %v59
    %70 = vrot.lane.b32.xlu0 %v56, 127
    %v71 = vpop.permute.xlu0 %70
    %72 = vrot.lane.b32.xlu0 %v57, 127
    %v73 = vpop.permute.xlu0 %72
    %74 = vrot.lane.b32.xlu0 %v58, 127
    %v75 = vpop.permute.xlu0 %74
    %76 = vrot.lane.b32.xlu0 %v59, 127
    %v77 = vpop.permute.xlu0 %76
    %v78 = vlaneseq
    %v79 = vand.u32 %v78, 127
    %vm80 = vcmp.lt.s32.totalorder %v79, 127
    %v81 = vsel %vm80, %v75, %v77
    %v82 = vsel %vm80, %v73, %v75
    %v83 = vsel %vm80, %v71, %v73
    %v84 = vsel %vm80, %v77, %v71
    %85 = vset.pattern.permute.xlu0 1
    %86 = vperm.xlu0 %85, %v60
    %v87 = vpop.permute.xlu0 %86
    %v89 = vmul.f32 %v87, %v83
    %v90 = vmul.f32 %v87, %v82
    %v91 = vmul.f32 %v87, %v81
    %v92 = vmul.f32 %v87, %v84
    %v93 = vadd.f32 %v66, %v89
    %v94 = vadd.f32 %v67, %v90
    %v95 = vadd.f32 %v68, %v91
    %v96 = vadd.f32 %v69, %v92
    %97 = vrot.lane.b32.xlu0 %v56, 126
    %v98 = vpop.permute.xlu0 %97
    %99 = vrot.lane.b32.xlu0 %v57, 126
    %v100 = vpop.permute.xlu0 %99
    %101 = vrot.lane.b32.xlu0 %v58, 126
    %v102 = vpop.permute.xlu0 %101
    %103 = vrot.lane.b32.xlu0 %v59, 126
    %v104 = vpop.permute.xlu0 %103
    %vm105 = vcmp.lt.s32.totalorder %v79, 126
    %v106 = vsel %vm105, %v102, %v104
    %v107 = vsel %vm105, %v100, %v102
    %v108 = vsel %vm105, %v98, %v100
    %v109 = vsel %vm105, %v104, %v98
    %110 = vset.pattern.permute.xlu0 2
    %111 = vperm.xlu0 %110, %v60
    %v112 = vpop.permute.xlu0 %111
    %v114 = vmul.f32 %v112, %v108
    %v115 = vmul.f32 %v112, %v107
    %v116 = vmul.f32 %v112, %v106
    %v117 = vmul.f32 %v112, %v109
    %v118 = vadd.f32 %v93, %v114
    %v119 = vadd.f32 %v94, %v115
    %v120 = vadd.f32 %v95, %v116
    %v121 = vadd.f32 %v96, %v117
    %122 = vrot.lane.b32.xlu0 %v56, 106
    %v123 = vpop.permute.xlu0 %122
    %124 = vrot.lane.b32.xlu0 %v57, 106
    %v125 = vpop.permute.xlu0 %124
    %126 = vrot.lane.b32.xlu0 %v58, 106
    %v127 = vpop.permute.xlu0 %126
    %128 = vrot.lane.b32.xlu0 %v59, 106
    %v129 = vpop.permute.xlu0 %128
    %vm130 = vcmp.lt.s32.totalorder %v79, 106
    %v131 = vsel %vm130, %v127, %v129
    %v132 = vsel %vm130, %v125, %v127
    %v133 = vsel %vm130, %v123, %v125
    %v134 = vsel %vm130, %v129, %v123
    %135 = vset.pattern.permute.xlu0 3
    %136 = vperm.xlu0 %135, %v60
    %v137 = vpop.permute.xlu0 %136
    %v139 = vmul.f32 %v137, %v133
    %v140 = vmul.f32 %v137, %v132
    %v141 = vmul.f32 %v137, %v131
    %v142 = vmul.f32 %v137, %v134
    %v143 = vadd.f32 %v118, %v139
    %v144 = vadd.f32 %v119, %v140
    %v145 = vadd.f32 %v120, %v141
    %v146 = vadd.f32 %v121, %v142
    %147 = vrot.lane.b32.xlu0 %v56, 105
    %v148 = vpop.permute.xlu0 %147
    %149 = vrot.lane.b32.xlu0 %v57, 105
    %v150 = vpop.permute.xlu0 %149
    %151 = vrot.lane.b32.xlu0 %v58, 105
    %v152 = vpop.permute.xlu0 %151
    %153 = vrot.lane.b32.xlu0 %v59, 105
    %v154 = vpop.permute.xlu0 %153
    %vm155 = vcmp.lt.s32.totalorder %v79, 105
    %v156 = vsel %vm155, %v152, %v154
    %v157 = vsel %vm155, %v150, %v152
    %v158 = vsel %vm155, %v148, %v150
    %v159 = vsel %vm155, %v154, %v148
    %160 = vset.pattern.permute.xlu0 4
    %161 = vperm.xlu0 %160, %v60
    %v162 = vpop.permute.xlu0 %161
    %v164 = vmul.f32 %v162, %v158
    %v165 = vmul.f32 %v162, %v157
    %v166 = vmul.f32 %v162, %v156
    %v167 = vmul.f32 %v162, %v159
    %v168 = vadd.f32 %v143, %v164
    %v169 = vadd.f32 %v144, %v165
    %v170 = vadd.f32 %v145, %v166
    %v171 = vadd.f32 %v146, %v167
    %172 = vrot.lane.b32.xlu0 %v56, 104
    %v173 = vpop.permute.xlu0 %172
    %174 = vrot.lane.b32.xlu0 %v57, 104
    %v175 = vpop.permute.xlu0 %174
    %176 = vrot.lane.b32.xlu0 %v58, 104
    %v177 = vpop.permute.xlu0 %176
    %178 = vrot.lane.b32.xlu0 %v59, 104
    %v179 = vpop.permute.xlu0 %178
    %vm180 = vcmp.lt.s32.totalorder %v79, 104
    %v181 = vsel %vm180, %v177, %v179
    %v182 = vsel %vm180, %v175, %v177
    %v183 = vsel %vm180, %v173, %v175
    %v184 = vsel %vm180, %v179, %v173
    %185 = vset.pattern.permute.xlu0 5
    %186 = vperm.xlu0 %185, %v60
    %v187 = vpop.permute.xlu0 %186
    %v189 = vmul.f32 %v187, %v183
    %v190 = vmul.f32 %v187, %v182
    %v191 = vmul.f32 %v187, %v181
    %v192 = vmul.f32 %v187, %v184
    %v193 = vadd.f32 %v168, %v189
    %v194 = vadd.f32 %v169, %v190
    %v195 = vadd.f32 %v170, %v191
    %v196 = vadd.f32 %v171, %v192
    %197 = vrot.lane.b32.xlu0 %v56, 84
    %v198 = vpop.permute.xlu0 %197
    %199 = vrot.lane.b32.xlu0 %v57, 84
    %v200 = vpop.permute.xlu0 %199
    %201 = vrot.lane.b32.xlu0 %v58, 84
    %v202 = vpop.permute.xlu0 %201
    %203 = vrot.lane.b32.xlu0 %v59, 84
    %v204 = vpop.permute.xlu0 %203
    %vm205 = vcmp.lt.s32.totalorder %v79, 84
    %v206 = vsel %vm205, %v202, %v204
    %v207 = vsel %vm205, %v200, %v202
    %v208 = vsel %vm205, %v198, %v200
    %v209 = vsel %vm205, %v204, %v198
    %210 = vset.pattern.permute.xlu0 6
    %211 = vperm.xlu0 %210, %v60
    %v212 = vpop.permute.xlu0 %211
    %v214 = vmul.f32 %v212, %v208
    %v215 = vmul.f32 %v212, %v207
    %v216 = vmul.f32 %v212, %v206
    %v217 = vmul.f32 %v212, %v209
    %v218 = vadd.f32 %v193, %v214
    %v219 = vadd.f32 %v194, %v215
    %v220 = vadd.f32 %v195, %v216
    %v221 = vadd.f32 %v196, %v217
    %222 = vrot.lane.b32.xlu0 %v56, 83
    %v223 = vpop.permute.xlu0 %222
    %224 = vrot.lane.b32.xlu0 %v57, 83
    %v225 = vpop.permute.xlu0 %224
    %226 = vrot.lane.b32.xlu0 %v58, 83
    %v227 = vpop.permute.xlu0 %226
    %228 = vrot.lane.b32.xlu0 %v59, 83
    %v229 = vpop.permute.xlu0 %228
    %vm230 = vcmp.lt.s32.totalorder %v79, 83
    %v231 = vsel %vm230, %v227, %v229
    %v232 = vsel %vm230, %v225, %v227
    %v233 = vsel %vm230, %v223, %v225
    %v234 = vsel %vm230, %v229, %v223
    %235 = vset.pattern.permute.xlu0 7
    %236 = vperm.xlu0 %235, %v60
    %v237 = vpop.permute.xlu0 %236
    %v239 = vmul.f32 %v237, %v233
    %v240 = vmul.f32 %v237, %v232
    %v241 = vmul.f32 %v237, %v231
    %v242 = vmul.f32 %v237, %v234
    %v243 = vadd.f32 %v218, %v239
    %v244 = vadd.f32 %v219, %v240
    %v245 = vadd.f32 %v220, %v241
    %v246 = vadd.f32 %v221, %v242
    %247 = vrot.lane.b32.xlu0 %v56, 82
    %v248 = vpop.permute.xlu0 %247
    %249 = vrot.lane.b32.xlu0 %v57, 82
    %v250 = vpop.permute.xlu0 %249
    %251 = vrot.lane.b32.xlu0 %v58, 82
    %v252 = vpop.permute.xlu0 %251
    %253 = vrot.lane.b32.xlu0 %v59, 82
    %v254 = vpop.permute.xlu0 %253
    %vm255 = vcmp.lt.s32.totalorder %v79, 82
    %v256 = vsel %vm255, %v252, %v254
    %v257 = vsel %vm255, %v250, %v252
    %v258 = vsel %vm255, %v248, %v250
    %v259 = vsel %vm255, %v254, %v248
    %260 = vset.pattern.permute.xlu0 8
    %261 = vperm.xlu0 %260, %v60
    %v262 = vpop.permute.xlu0 %261
    %v264 = vmul.f32 %v262, %v258
    %v265 = vmul.f32 %v262, %v257
    %v266 = vmul.f32 %v262, %v256
    %v267 = vmul.f32 %v262, %v259
    %v268 = vadd.f32 %v243, %v264
    %v269 = vadd.f32 %v244, %v265
    %v270 = vadd.f32 %v245, %v266
    %v271 = vadd.f32 %v246, %v267
    %v276 = vrot.slane %v268, 2
    %v277 = vrot.slane %v269, 2
    %v278 = vrot.slane %v270, 2
    %v279 = vrot.slane %v271, 2
    %v284 = vadd.f32 %v268, %v276
    %v285 = vadd.f32 %v269, %v277
    %v286 = vadd.f32 %v270, %v278
    %v287 = vadd.f32 %v271, %v279
    %v288 = vrot.slane %v268, 4
    %v289 = vrot.slane %v269, 4
    %v290 = vrot.slane %v270, 4
    %v291 = vrot.slane %v271, 4
    %v296 = vadd.f32 %v284, %v288
    %v297 = vadd.f32 %v285, %v289
    %v298 = vadd.f32 %v286, %v290
    %v299 = vadd.f32 %v287, %v291
    %v300 = vand.u32 2147483647, %v296
    %v301 = vand.u32 2147483647, %v297
    %v302 = vand.u32 2147483647, %v298
    %v303 = vand.u32 2147483647, %v299
    %v304 = vld [vmem:[#allocation5] sm:$0xf]
    %v306 = vperm.slane %v304, 0
    %v307 = vperm.slane %v304, 1
    %v308 = vperm.slane %v304, 2
    %v309 = vperm.slane %v304, 3
    %v314 = vmul.f32 %v300, %v306
    %v315 = vmul.f32 %v301, %v307
    %v316 = vmul.f32 %v302, %v308
    %v317 = vmul.f32 %v303, %v309
    %vm318 = vcmask 1041408
    %v319 = vsel %vm318, %v314, 0.0
    %v320 = vsel %vm318, %v315, 0.0
    %v321 = vadd.f32 %v319, %v320
    %v322 = vsel %vm318, %v316, 0.0
    %v323 = vadd.f32 %v321, %v322
    %v324 = vsel %vm318, %v317, 0.0
    %v325 = vadd.f32 %v323, %v324
    %326 = vadd.xlane.f32.xlu0 %v325
    %v327 = vpop.xlane.xlu0 %326
    %v328 = vrot.slane %v327, 4
    %v329 = vadd.f32 %v327, %v328
    %v330 = vrot.slane %v329, 2
    %v331 = vadd.f32 %v329, %v330
    %v332 = vrot.slane %v331, 1
    %v333 = vadd.f32 %v331, %v332
    %s334 = vtos %v333
    %v335 = vstv %s334
    %336 = vst [vmem:[#allocation8] sm:$0xff] %v335
    // Predicated region
    $region26: #{tpu_custom_call.1} parent=1 // pred_check
      _
    $region27: #{tpu_custom_call.1} parent=1 // pred_check_branch
      %338 = sbr.rel (0) target = $region29
    $region28: #{tpu_custom_call.1} parent=1 // pred_region
      %340 = vsyncadd [#allocation4], 0
      %s342 = sshll.u32 [#allocation8], 4
      %s343 = int_to_ptr.vmem [resolvable:$true] %s342
      %s344 = sshll.u32 %s3, 4
      %s345 = int_to_ptr.hbm [resolvable:$true] %s344
      %347 = dma.vmem_to_hbm [thread:$0]  %s343, 128, %s345, [#allocation4]
    $region29: #{tpu_custom_call.1} parent=1 // pred_fallthru
      _
    // Predicated region
    $region30: #{tpu_custom_call.1} parent=1 // pred_check
      _
    $region31: #{tpu_custom_call.1} parent=1 // pred_check_branch
      %349 = sbr.rel (0) target = $region33
    $region32: #{tpu_custom_call.1} parent=1 // pred_region
      %351 = dma.done [#allocation4], 128
    $region33: #{tpu_custom_call.1} parent=1 // pred_fallthru
      _
    %352 = vsyncpa [#allocation3], 1
    %353 = vsyncpa [#allocation6], 1
    %354 = vsyncpa [#allocation4], 1

</llo_original>
